<compile_context>
chip_gen: v6e
topology: v6e:2x2x1
jax: 0.10.0
libtpu: 0.0.40
codegen_flags: <defaults>
</compile_context>

<pallas_src>
import jax
import jax.numpy as jnp
from jax.experimental import pallas as pl
from jax.experimental.pallas import tpu as pltpu

IN_FEATURES = 1
OUT_FEATURES = 10


def _stable_softplus(r):
    # softplus(r) = log1p(exp(r)), stable for large |r|
    return jnp.where(r > 0, r + jnp.log1p(jnp.exp(-r)), jnp.log1p(jnp.exp(r)))


def bayes_linear_kernel(params_ref, x_ref, o_ref):
    # params_ref: (6, OUT_FEATURES)
    #   rows 0..1 -> mu   (w_mu, b_mu)
    #   rows 2..3 -> rho  (w_rho, b_rho)
    #   rows 4..5 -> eps  (w_eps, b_eps)
    params = params_ref[...]                      # (6, OUT)
    mu = params[0:2, :]                           # (2, OUT)
    rho = params[2:4, :]                          # (2, OUT)
    eps = params[4:6, :]                          # (2, OUT)

    # Reparameterized sample for both weight row and bias row in one VPU slab.
    sampled = mu + _stable_softplus(rho) * eps    # (2, OUT)
    w_row = sampled[0:1, :]                       # (1, OUT)  == W.T since in_features=1
    b_row = sampled[1:2, :]                       # (1, OUT)

    # y = x @ W.T + b  ==  x * w_row + b_row  (broadcast multiply-add, no MXU)
    o_ref[...] = x_ref[...] * w_row + b_row       # (TILE_B, 1) * (1, OUT) -> (TILE_B, OUT)


def bayes_linear(x, w_mu, w_rho, w_eps, b_mu, b_rho, b_eps):
    """x: (batch, IN_FEATURES=1); w_*: (OUT, 1); b_*: (1, OUT). Returns (batch, OUT)."""
    batch = x.shape[0]

    # Pack + pre-transpose params in plain JAX (free glue): (6, OUT_FEATURES)
    params = jnp.concatenate(
        [
            w_mu.reshape(1, OUT_FEATURES),   # w_mu.T  (in_features == 1)
            b_mu.reshape(1, OUT_FEATURES),
            w_rho.reshape(1, OUT_FEATURES),
            b_rho.reshape(1, OUT_FEATURES),
            w_eps.reshape(1, OUT_FEATURES),
            b_eps.reshape(1, OUT_FEATURES),
        ],
        axis=0,
    ).astype(jnp.float32)

    # Batch tiling: single block at small batch; 512-row lane-dense tiles when large.
    if batch >= 512 and batch % 512 == 0:
        tile_b = 512
    else:
        tile_b = batch
    grid = (batch // tile_b,)

    return pl.pallas_call(
        bayes_linear_kernel,
        out_shape=jax.ShapeDtypeStruct((batch, OUT_FEATURES), jnp.float32),
        grid_spec=pltpu.PrefetchScalarGridSpec(
            num_scalar_prefetch=0,
            grid=grid,
            in_specs=[
                pl.BlockSpec((6, OUT_FEATURES), lambda i: (0, 0)),       # packed params
                pl.BlockSpec((tile_b, IN_FEATURES), lambda i: (i, 0)),   # x
            ],
            out_specs=pl.BlockSpec((tile_b, OUT_FEATURES), lambda i: (i, 0)),
        ),
        compiler_params=pltpu.CompilerParams(
            dimension_semantics=("parallel",),
        ),
    )(params, x)


if __name__ == "__main__":
    key = jax.random.PRNGKey(0)
    k_x, k_wmu, k_bmu, k_weps, k_beps = jax.random.split(key, 5)

    batch = 8

    # Deterministic parameter init (mirrors BayesLinear defaults:
    # mu ~ N(0, 0.1), log_sigma (rho) filled with sigma_init = -7.0)
    w_mu = 0.1 * jax.random.normal(k_wmu, (OUT_FEATURES, IN_FEATURES), jnp.float32)
    w_rho = jnp.full((OUT_FEATURES, IN_FEATURES), -7.0, jnp.float32)
    b_mu = 0.1 * jax.random.normal(k_bmu, (1, OUT_FEATURES), jnp.float32)
    b_rho = jnp.full((1, OUT_FEATURES), -7.0, jnp.float32)

    # Deterministic Gaussian noise for the reparameterization trick.
    w_eps = jax.random.normal(k_weps, (OUT_FEATURES, IN_FEATURES), jnp.float32)
    b_eps = jax.random.normal(k_beps, (1, OUT_FEATURES), jnp.float32)

    # Input: [batch, in_features] = [8, 1]
    x = jax.random.normal(k_x, (batch, IN_FEATURES), jnp.float32)

    out = bayes_linear(x, w_mu, w_rho, w_eps, b_mu, b_rho, b_eps)
    jax.block_until_ready(out)

    # Reference check (pure JAX, stable softplus)
    w = w_mu + jax.nn.softplus(w_rho) * w_eps
    b = b_mu + jax.nn.softplus(b_rho) * b_eps
    ref = x @ w.T + b
    assert out.shape == (batch, OUT_FEATURES)
    assert jnp.allclose(out, ref, atol=1e-5, rtol=1e-5)

    print("KERNEL_OK")
</pallas_src>

<mosaic_0001>
module attributes {stable_mosaic.version = 11 : i64} {
  func.func @bayes_linear_kernel(%arg0: i32, %arg1: memref<6x10xf32, #tpu.memory_space<vmem>>, %arg2: memref<8x1xf32, #tpu.memory_space<vmem>>, %arg3: memref<8x10xf32, #tpu.memory_space<vmem>>) attributes {dimension_semantics = [#tpu.dimension_semantics<parallel>], iteration_bounds = array<i64: 1>, scalar_prefetch = 0 : i64, scratch_operands = 0 : i64, tpu.core_type = #tpu.core_type<tc>, window_params = [{pipeline_mode = #tpu.pipeline_mode<synchronous>, transform_indices = @transform_0, window_bounds = array<i64: 6, 10>}, {transform_indices = @transform_1, window_bounds = array<i64: 8, 1>}, {transform_indices = @transform_2, window_bounds = array<i64: 8, 10>}]} {
    %c0 = arith.constant 0 : index
    %c0_0 = arith.constant 0 : index
    %0 = vector.load %arg1[%c0, %c0_0] : memref<6x10xf32, #tpu.memory_space<vmem>>, vector<6x10xf32>
    %1 = vector.extract_strided_slice %0 {offsets = [0, 0], sizes = [2, 10], strides = [1, 1]} : vector<6x10xf32> to vector<2x10xf32>
    %2 = vector.extract_strided_slice %0 {offsets = [2, 0], sizes = [2, 10], strides = [1, 1]} : vector<6x10xf32> to vector<2x10xf32>
    %3 = vector.extract_strided_slice %0 {offsets = [4, 0], sizes = [2, 10], strides = [1, 1]} : vector<6x10xf32> to vector<2x10xf32>
    %cst = arith.constant 0.000000e+00 : f32
    %4 = vector.broadcast %cst : f32 to vector<2x10xf32>
    %5 = arith.cmpf ogt, %2, %4 : vector<2x10xf32>
    %cst_1 = arith.constant 0.000000e+00 : f32
    %6 = vector.broadcast %cst_1 : f32 to vector<2x10xf32>
    %7 = arith.subf %6, %2 : vector<2x10xf32>
    %8 = math.exp %7 : vector<2x10xf32>
    %9 = math.log1p %8 : vector<2x10xf32>
    %10 = arith.addf %2, %9 : vector<2x10xf32>
    %11 = math.exp %2 : vector<2x10xf32>
    %12 = math.log1p %11 : vector<2x10xf32>
    %13 = arith.select %5, %10, %12 : vector<2x10xi1>, vector<2x10xf32>
    %14 = arith.mulf %13, %3 : vector<2x10xf32>
    %15 = arith.addf %1, %14 : vector<2x10xf32>
    %16 = vector.extract_strided_slice %15 {offsets = [0, 0], sizes = [1, 10], strides = [1, 1]} : vector<2x10xf32> to vector<1x10xf32>
    %17 = vector.extract_strided_slice %15 {offsets = [1, 0], sizes = [1, 10], strides = [1, 1]} : vector<2x10xf32> to vector<1x10xf32>
    %c0_2 = arith.constant 0 : index
    %c0_3 = arith.constant 0 : index
    %18 = vector.load %arg2[%c0_2, %c0_3] : memref<8x1xf32, #tpu.memory_space<vmem>>, vector<8x1xf32>
    %19 = vector.broadcast %18 : vector<8x1xf32> to vector<8x10xf32>
    %20 = vector.broadcast %16 : vector<1x10xf32> to vector<8x10xf32>
    %21 = arith.mulf %19, %20 : vector<8x10xf32>
    %22 = vector.broadcast %17 : vector<1x10xf32> to vector<8x10xf32>
    %23 = arith.addf %21, %22 : vector<8x10xf32>
    %c0_4 = arith.constant 0 : index
    %c0_5 = arith.constant 0 : index
    %24 = vector.load %arg3[%c0_4, %c0_5] : memref<8x10xf32, #tpu.memory_space<vmem>>, vector<8x10xf32>
    tpu.vector_store %arg3[%c0_4, %c0_5], %23 {strides = array<i32>} : memref<8x10xf32, #tpu.memory_space<vmem>>, vector<8x10xf32>,
    return
  }
  func.func @transform_0(%arg0: i32) -> (i32, i32) {
    %c0_i32 = arith.constant 0 : i32
    %c0_i32_0 = arith.constant 0 : i32
    %c0_i32_1 = arith.constant 0 : i32
    return %c0_i32, %c0_i32_0 : i32, i32
  }
  func.func @transform_1(%arg0: i32) -> (i32, i32) {
    %c0_i32 = arith.constant 0 : i32
    %c0_i32_0 = arith.constant 0 : i32
    return %arg0, %c0_i32 : i32, i32
  }
  func.func @transform_2(%arg0: i32) -> (i32, i32) {
    %c0_i32 = arith.constant 0 : i32
    %c0_i32_0 = arith.constant 0 : i32
    return %arg0, %c0_i32 : i32, i32
  }
}

</mosaic_0001>

<llo_original>
// kernel: tpu_custom_call.1
$region0: #{tpu_custom_call.1}
  #allocation0 [shape = 'u32[]', space=smem, size = 0x4, offset = 0x4, fixed_abs, tag = 'smem constant byte address 0x4 - core index']
  #allocation1 [shape = 'u32[144,128]{1,0:T(1,128)}', space=vmem, size = 0x12000, scoped, tag = 'internal scratch']
  %s0 = inlined_call_operand.vmem [shape: f32[6,10], index: 0, kind: input, shape index: {}]
  %s1 = inlined_call_operand.vmem [shape: f32[8,1], index: 1, kind: input, shape index: {}]
  %s2 = inlined_call_operand.hbm [shape: f32[8,10], index: 2, kind: output, shape index: {}]
  %s3 = sld [smem:[#allocation0]]
  $region18: #{tpu_custom_call.1} parent=0
    _
  %s5 = ssub.s32 1, %s3
  %s6 = scalar_select 0, %s5, %s3
  $region1: #{tpu_custom_call.1} parent=0
    #allocation2 [shape = 'u8[4096]{0}', space=vmem, size = 0x1000, scoped, tag = 'output window, operand 0, single buffered']
    #allocation3 [shape = 's32[1]{0}', space=sflag, size = 0x4, scoped, tag = 'scoped memory for tpu_custom_call.1']
    %7 = vsyncpa [#allocation3], 0
    // Predicated region
    $region2: #{tpu_custom_call.1} parent=1 // pred_check
      _
    $region3: #{tpu_custom_call.1} parent=1 // pred_check_branch
      %9 = sbr.rel (0) target = $region5
    $region4: #{tpu_custom_call.1} parent=1 // pred_region
      _
    $region5: #{tpu_custom_call.1} parent=1 // pred_fallthru
      _
    // Predicated region
    $region6: #{tpu_custom_call.1} parent=1 // pred_check
      _
    $region7: #{tpu_custom_call.1} parent=1 // pred_check_branch
      %11 = sbr.rel (0) target = $region9
    $region8: #{tpu_custom_call.1} parent=1 // pred_region
      _
    $region9: #{tpu_custom_call.1} parent=1 // pred_fallthru
      _
    %v12 = vld [vmem:[%s0] sm:$0x3f]
    %vm13 = vcmp.gt.f32.partialorder %v12, 0.0
    %v14 = vsub.f32 0.0, %v12
    %v15 = vmul.f32 %v14, 1.442695
    %v16 = vpow.pop %v15
    %v17 = vadd.f32 %v16, 1.0
    %v18 = vlog2.pop %v17
    %v19 = vmul.f32 %v18, 0.6931472
    %v20 = vmul.f32 -0.5, %v16
    %v21 = vadd.f32 %v20, 1.0
    %v22 = vmul.f32 %v21, %v16
    %v23 = vand.u32 2147483647, %v16
    %vm24 = vcmp.lt.f32.partialorder %v23, 0.0004427343
    %v25 = vsel %vm24, %v22, %v19
    %v26 = vadd.f32 %v12, %v25
    %v27 = vmul.f32 %v12, 1.442695
    %v28 = vpow.pop %v27
    %v29 = vadd.f32 %v28, 1.0
    %v30 = vlog2.pop %v29
    %v31 = vmul.f32 %v30, 0.6931472
    %v32 = vmul.f32 -0.5, %v28
    %v33 = vadd.f32 %v32, 1.0
    %v34 = vmul.f32 %v33, %v28
    %v35 = vand.u32 2147483647, %v28
    %vm36 = vcmp.lt.f32.partialorder %v35, 0.0004427343
    %v37 = vsel %vm36, %v34, %v31
    %v38 = vsel %vm13, %v26, %v37
    %v40 = vrot.slane %v12, 2
    %v42 = vmul.f32 %v38, %v40
    %v44 = vrot.slane %v42, 2
    %v46 = vadd.f32 %v12, %v44
    %v47 = vld [vmem:[%s1] sm:$0xff]
    %49 = vset.pattern.permute.xlu0 0
    %50 = vperm.xlu0 %49, %v47
    %v51 = vpop.permute.xlu0 %50
    %v53 = vlaneseq
    %v54 = vshrl.u32 %v53, 7
    %v55 = vsub.s32 0, %v54
    %v56 = vrot.slane %v46, %v55
    %v57 = vmul.f32 %v51, %v56
    %v58 = vlaneseq
    %v59 = vshrl.u32 %v58, 7
    %v60 = vsub.s32 1, %v59
    %v61 = vrot.slane %v46, %v60
    %v62 = vadd.f32 %v57, %v61
    %vm63 = vcmask 80896
    %64 = vst.msk [vmem:[#allocation2] sm:$0xff] %vm63, %v62
    // Predicated region
    $region10: #{tpu_custom_call.1} parent=1 // pred_check
      _
    $region11: #{tpu_custom_call.1} parent=1 // pred_check_branch
      %66 = sbr.rel (0) target = $region13
    $region12: #{tpu_custom_call.1} parent=1 // pred_region
      %s68 = ssub.s32 128, 128
      %69 = vsyncadd [#allocation3], %s68
      %s71 = sshll.u32 [#allocation2], 4
      %s72 = int_to_ptr.vmem [resolvable:$true] %s71
      %74 = dma.vmem_to_hbm [thread:$0]  %s72, 128, %s2, [#allocation3]
    $region13: #{tpu_custom_call.1} parent=1 // pred_fallthru
      _
    // Predicated region
    $region14: #{tpu_custom_call.1} parent=1 // pred_check
      _
    $region15: #{tpu_custom_call.1} parent=1 // pred_check_branch
      %76 = sbr.rel (0) target = $region17
    $region16: #{tpu_custom_call.1} parent=1 // pred_region
      %77 = dma.done [#allocation3], 128
    $region17: #{tpu_custom_call.1} parent=1 // pred_fallthru
      _
    %78 = vsyncpa [#allocation3], 1

</llo_original>
